<compile_context>
chip_gen: v7x
topology: tpu7x:2x2x1
jax: 0.10.0
libtpu: 0.0.40
codegen_flags: <defaults>
</compile_context>

<pallas_src>
import numpy as np
import jax
import jax.numpy as jnp
from jax.experimental import pallas as pl
from jax.experimental.pallas import tpu as pltpu

_LANE = 128     # lane width of a vreg
_SUBLANE = 8    # sublane depth of a vreg (f32)


def _round_up(x, m):
    return ((x + m - 1) // m) * m


def _concrete_int_exponents(n_range, max_exp=64):
    """Exponents as a list of small non-negative Python ints if `n_range`
    is concrete and integer-valued; otherwise None (-> exp/log fallback)."""
    try:
        n_np = np.asarray(n_range, dtype=np.float64).reshape(-1)
    except Exception:
        return None  # traced / abstract value
    if n_np.size == 0 or not np.all(np.isfinite(n_np)):
        return None
    n_int = np.rint(n_np).astype(np.int64)
    if np.any(n_np != n_int) or np.any(n_int < 0) or np.any(n_int > max_exp):
        return None
    return [int(v) for v in n_int]


def _make_chain_kernel(exps, n_pad):
    """Integer power basis via an unrolled multiply chain (VPU only, exact)."""
    max_e = max(exps)

    def kernel(s_ref, o_ref):
        # s_ref: VMEM f32[1, block_s]       lane-dense row of s values
        # o_ref: VMEM f32[n_pad, block_s]   o[j, i] = s[i] ** exps[j]
        s = s_ref[...]
        pows = [jnp.ones_like(s)]                      # s**0
        for _ in range(max_e):                         # <= deg lane-dense muls
            pows.append(pows[-1] * s)
        rows = [pows[e] for e in exps]
        rows += [pows[0]] * (n_pad - len(exps))        # sublane padding = 1.0
        o_ref[...] = jnp.concatenate(rows, axis=0)     # single full-tile store

    return kernel


def _exp_log_kernel(n_ref, s_ref, o_ref):
    """Fallback for general (fractional / traced) exponents: s**n = exp(n*log s).

    Lane-dense log: one EUP log vreg per 128 s values. Requires s > 0 for n > 0.
    """
    s = s_ref[...]                                     # (1, block_s)
    n = n_ref[...]                                     # (n_pad, 1)
    log_s = jnp.log(s)                                 # lane-dense EUP log
    # n == 0 guard restores jnp.power semantics (0**0 == 1, x**0 == 1).
    o_ref[...] = jnp.where(n == 0.0, jnp.float32(1.0), jnp.exp(n * log_s))


def polynomial_basis_batched(n_range, s_values, *, block_s=32768, trim=True):
    """Batched basis on TPU: out[j, i] = s_values[i] ** n_range[j].

    Transposed, lane-dense layout (exponents on sublanes, s on lanes) so that
    for realistic degrees the tiles carry essentially no padding.
    """
    n1d = jnp.asarray(n_range, jnp.float32).reshape(-1)
    deg1 = int(n1d.shape[0])
    n_pad = _round_up(max(deg1, 1), _SUBLANE)

    s1d = jnp.asarray(s_values, jnp.float32).reshape(-1)
    num_s = int(s1d.shape[0])

    # ---- choose a lane-dense s tiling -----------------------------------
    lane_groups = pl.cdiv(num_s, _LANE)                    # 128-wide groups
    blk_groups = max(1, min(block_s // _LANE, lane_groups))
    if lane_groups >= 2:                                    # >=2 grid steps so
        blk_groups = min(blk_groups, pl.cdiv(lane_groups, 2))  # v7x's 2 TCs work
    # prefer an exact tiling (no junk rows) if a divisor close to target exists
    for d in range(blk_groups, max(1, blk_groups // 2) - 1, -1):
        if lane_groups % d == 0:
            blk_groups = d
            break
    num_blocks = pl.cdiv(lane_groups, blk_groups)
    blk_s = blk_groups * _LANE
    s_pad = num_blocks * blk_s

    # pad s with 1.0 (finite through both kernels), lay out as lane-dense row
    s_row = jnp.ones((1, s_pad), jnp.float32).at[0, :num_s].set(s1d)

    grid = (num_blocks,)
    out_shape = jax.ShapeDtypeStruct((n_pad, s_pad), jnp.float32)
    out_spec = pl.BlockSpec((n_pad, blk_s), lambda i: (0, i))
    s_spec = pl.BlockSpec((1, blk_s), lambda i: (0, i))
    cparams = pltpu.CompilerParams(dimension_semantics=("parallel",))

    exps = _concrete_int_exponents(n_range)
    if exps is not None:
        out = pl.pallas_call(
            _make_chain_kernel(exps, n_pad),
            out_shape=out_shape,
            grid_spec=pltpu.PrefetchScalarGridSpec(
                num_scalar_prefetch=0, grid=grid,
                in_specs=[s_spec], out_specs=out_spec),
            compiler_params=cparams,
        )(s_row)
    else:
        # TODO(synk): exp/log fallback is only exact for s > 0; integer n_range
        # takes the multiply-chain path above, which is exact for any s.
        n_col = jnp.zeros((n_pad, 1), jnp.float32).at[:deg1, 0].set(n1d)
        out = pl.pallas_call(
            _exp_log_kernel,
            out_shape=out_shape,
            grid_spec=pltpu.PrefetchScalarGridSpec(
                num_scalar_prefetch=0, grid=grid,
                in_specs=[pl.BlockSpec((n_pad, 1), lambda i: (0, 0)), s_spec],
                out_specs=out_spec),
            compiler_params=cparams,
        )(n_col, s_row)

    if trim and (deg1 != n_pad or num_s != s_pad):
        out = out[:deg1, :num_s]
    return out


class Polynomial:
    """Eigenbasis expansion using polynomials (JAX / Pallas-TPU version).

    forward(n_range, s) -> [s ** n_range], matching the PyTorch module.  The
    single-scalar-s case is ~32 B of useful output, so it is left to plain XLA
    (a standalone pallas_call there is pure launch/dispatch overhead);
    `polynomial_basis_batched` is the Pallas path for a whole grid of s values.
    """

    def __init__(self, deg, adaptive=False):
        self.deg, self.n_eig = deg, 1
        self.adaptive = adaptive  # does nothing (matches PyTorch)

    def forward(self, n_range, s):
        # TODO(synk): in an end-to-end Galerkin layer this power should be
        # fused into the downstream GalLinear matmul rather than materialized.
        return [jnp.power(jnp.asarray(s, jnp.float32),
                          jnp.asarray(n_range, jnp.float32))]

    __call__ = forward


if __name__ == "__main__":
    key = jax.random.PRNGKey(0)
    k_s, k_batch = jax.random.split(key)

    deg = 7
    mod = Polynomial(deg)
    n_range = jnp.arange(deg + 1, dtype=jnp.float32)   # [0, 1, ..., deg]

    # --- module forward (single scalar s): plain XLA per perf review -----
    s = jax.random.uniform(k_s, (), minval=0.5, maxval=1.5, dtype=jnp.float32)
    basis = jax.block_until_ready(mod(n_range, s))
    ref = np.power(float(s), np.asarray(n_range))
    assert len(basis) == 1 and basis[0].shape == n_range.shape
    assert jnp.allclose(basis[0], ref, rtol=1e-5, atol=1e-6)

    # --- Pallas kernel: integer-exponent multiply chain, batched s -------
    # negative s included on purpose: the multiply chain is exact there,
    # unlike the previous exp(n * log s) kernel.
    s_values = jax.random.uniform(k_batch, (200,), minval=-2.0, maxval=2.0,
                                  dtype=jnp.float32)
    out = jax.block_until_ready(polynomial_basis_batched(n_range, s_values))
    ref_b = np.power(np.asarray(s_values)[None, :], np.asarray(n_range)[:, None])
    assert out.shape == (deg + 1, 200)
    assert jnp.allclose(out, ref_b, rtol=1e-5, atol=1e-6)

    # --- Pallas kernel: lane-dense exp/log fallback (fractional exps) ----
    n_frac = jnp.array([0.0, 0.5, 1.0, 2.5], dtype=jnp.float32)
    s_pos = jax.random.uniform(jax.random.PRNGKey(1), (256,),
                               minval=0.1, maxval=2.0, dtype=jnp.float32)
    out_f = jax.block_until_ready(polynomial_basis_batched(n_frac, s_pos))
    ref_f = np.power(np.asarray(s_pos)[None, :], np.asarray(n_frac)[:, None])
    assert out_f.shape == (4, 256)
    assert jnp.allclose(out_f, ref_f, rtol=1e-5, atol=1e-5)

    print("KERNEL_OK")
</pallas_src>

<mosaic_0001>
module attributes {stable_mosaic.version = 11 : i64} {
  func.func @kernel(%arg0: i32, %arg1: memref<1x128xf32, #tpu.memory_space<vmem>>, %arg2: memref<8x128xf32, #tpu.memory_space<vmem>>) attributes {dimension_semantics = [#tpu.dimension_semantics<parallel>], iteration_bounds = array<i64: 2>, scalar_prefetch = 0 : i64, scratch_operands = 0 : i64, tpu.core_type = #tpu.core_type<tc>, window_params = [{transform_indices = @transform_0, window_bounds = array<i64: 1, 128>}, {transform_indices = @transform_1, window_bounds = array<i64: 8, 128>}]} {
    %c0 = arith.constant 0 : index
    %c0_0 = arith.constant 0 : index
    %0 = vector.load %arg1[%c0, %c0_0] : memref<1x128xf32, #tpu.memory_space<vmem>>, vector<1x128xf32>
    %cst = arith.constant 1.000000e+00 : f32
    %1 = vector.broadcast %cst : f32 to vector<1x128xf32>
    %2 = arith.mulf %1, %0 : vector<1x128xf32>
    %3 = arith.mulf %2, %0 : vector<1x128xf32>
    %4 = arith.mulf %3, %0 : vector<1x128xf32>
    %5 = arith.mulf %4, %0 : vector<1x128xf32>
    %6 = arith.mulf %5, %0 : vector<1x128xf32>
    %7 = arith.mulf %6, %0 : vector<1x128xf32>
    %8 = arith.mulf %7, %0 : vector<1x128xf32>
    %9 = tpu.concatenate %1, %2, %3, %4, %5, %6, %7, %8 in 0 : vector<1x128xf32>, vector<1x128xf32>, vector<1x128xf32>, vector<1x128xf32>, vector<1x128xf32>, vector<1x128xf32>, vector<1x128xf32>, vector<1x128xf32> -> vector<8x128xf32>
    %c0_1 = arith.constant 0 : index
    %c0_2 = arith.constant 0 : index
    %10 = vector.load %arg2[%c0_1, %c0_2] : memref<8x128xf32, #tpu.memory_space<vmem>>, vector<8x128xf32>
    tpu.vector_store %arg2[%c0_1, %c0_2], %9 {strides = array<i32>} : memref<8x128xf32, #tpu.memory_space<vmem>>, vector<8x128xf32>,
    return
  }
  func.func @transform_0(%arg0: i32) -> (i32, i32) {
    %c0_i32 = arith.constant 0 : i32
    %c0_i32_0 = arith.constant 0 : i32
    return %c0_i32, %arg0 : i32, i32
  }
  func.func @transform_1(%arg0: i32) -> (i32, i32) {
    %c0_i32 = arith.constant 0 : i32
    %c0_i32_0 = arith.constant 0 : i32
    return %c0_i32, %arg0 : i32, i32
  }
}

</mosaic_0001>

<llo_original>
// kernel: tpu_custom_call.1
$region0: #{tpu_custom_call.1}
  #allocation0 [shape = 'u32[]', space=smem, size = 0x4, offset = 0x4, fixed_abs, tag = 'smem constant byte address 0x4 - core index']
  #allocation1 [shape = 'u32[144,128]{1,0:T(1,128)}', space=vmem, size = 0x12000, scoped, tag = 'internal scratch']
  %s0 = inlined_call_operand.hbm [shape: f32[1,256], index: 0, kind: input, shape index: {}]
  %s1 = inlined_call_operand.hbm [shape: f32[8,256], index: 1, kind: output, shape index: {}]
  %s2 = sld [smem:[#allocation0]]
  $region41: #{tpu_custom_call.1} parent=0
    _
  %s4 = ssub.s32 1, %s2
  %s5 = scalar_select 0, %s4, %s2
  $region1: #{tpu_custom_call.1} parent=0
    #allocation2 [shape = 'u8[1024]{0}', space=vmem, size = 0x400, scoped, tag = 'input window, operand 0']
    #allocation3 [shape = 's32[2]{0}', space=sflag, size = 0x8, scoped, tag = 'scoped memory for tpu_custom_call.1']
    #allocation4 [shape = 's32[2]{0}', space=sflag, size = 0x8, scoped, tag = 'scoped memory for tpu_custom_call.1']
    #allocation5 [shape = 'u8[8192]{0}', space=vmem, size = 0x2000, scoped, tag = 'output window, operand 0']
    %6 = vsyncpa [#allocation3], 0
    %s7 = scalar_lea.sflag [#allocation3], 1
    %8 = vsyncpa %s7, 0
    %9 = vsyncpa [#allocation4], 0
    %s10 = scalar_lea.sflag [#allocation4], 1
    %11 = vsyncpa %s10, 0
    loop: start=0, step=1, limit=4
    $region2: #{tpu_custom_call.1} parent=1 // loop_pre_header
      _
    $region3: #{tpu_custom_call.1} parent=1 // loop_header
      %s13 = sphi 0, %s17
      %p14 = scmp.ge.s32.totalorder %s13, 4
      %s23 = sphi 0, %s25
      %s26 = sphi 0, %s23
      %s27 = sphi 0, %s26
      %s43 = sphi 0, %s27
      %s49 = sphi 0, %s51
      %s52 = sphi 0, %s49
      %s53 = sphi 0, %s52
      %s69 = sphi 0, %s53
    $region4: #{tpu_custom_call.1} parent=1 // loop_header_branch
      %16 = sbr.rel (%p14) target = $region8
    $region5: #{tpu_custom_call.1} parent=1 // loop_body
      %s18 = ssub.s32 %s13, 1
      %s19 = ssub.s32 %s13, 2
      %s20 = sadd.s32 %s13, 1
      %s21 = ssub.s32 %s13, %s20
      %p22 = scmp.eq.s32.totalorder %s21, 0
      %s24 = sadd.s32 %s23, 1
      %s25 = scalar_select %p22, %s23, %s24
      %p28 = pneg %p22
      %p29 = scmp.eq.s32.totalorder %s13, 1
      %p30 = por %p28, %p29
      %p31 = scmp.ne.s32.totalorder %s23, %s26
      %p32 = scmp.eq.s32.totalorder %s13, 0
      %p33 = por %p31, %p32
      %p34 = scmp.ne.s32.totalorder %s23, %s26
      %p35 = scmp.eq.s32.totalorder %s18, 1
      %p36 = por %p34, %p35
      %p37 = scmp.ne.s32.totalorder %s26, %s27
      %p38 = scmp.eq.s32.totalorder %s18, 0
      %p39 = por %p37, %p38
      %p40 = scmp.ne.s32.totalorder %s26, %s27
      %p41 = scmp.eq.s32.totalorder %s19, 1
      %p42 = por %p40, %p41
      %p44 = scmp.ne.s32.totalorder %s27, %s43
      %p45 = scmp.eq.s32.totalorder %s19, 0
      %p46 = por %p44, %p45
      %s47 = ssub.s32 %s13, %s20
      %p48 = scmp.eq.s32.totalorder %s47, 0
      %s50 = sadd.s32 %s49, 1
      %s51 = scalar_select %p48, %s49, %s50
      %p54 = pneg %p48
      %p55 = scmp.eq.s32.totalorder %s13, 1
      %p56 = por %p54, %p55
      %p57 = scmp.ne.s32.totalorder %s49, %s52
      %p58 = scmp.eq.s32.totalorder %s13, 0
      %p59 = por %p57, %p58
      %p60 = scmp.ne.s32.totalorder %s49, %s52
      %p61 = scmp.eq.s32.totalorder %s18, 1
      %p62 = por %p60, %p61
      %p63 = scmp.ne.s32.totalorder %s52, %s53
      %p64 = scmp.eq.s32.totalorder %s18, 0
      %p65 = por %p63, %p64
      %p66 = scmp.ne.s32.totalorder %s52, %s53
      %p67 = scmp.eq.s32.totalorder %s19, 1
      %p68 = por %p66, %p67
      %p70 = scmp.ne.s32.totalorder %s53, %s69
      %p71 = scmp.eq.s32.totalorder %s19, 0
      %p72 = por %p70, %p71
      %p73 = scmp.le.s32.totalorder 1, %s13
      %p74 = scmp.lt.s32.totalorder %s13, 3
      %p75 = pnand %p73, %p74
      %p76 = pneg %p75
      // Predicated region
      $region9: #{tpu_custom_call.1} parent=5 // pred_check
        _
      $region10: #{tpu_custom_call.1} parent=5 // pred_check_branch
        %78 = sbr.rel (%p75) target = $region12
      $region11: #{tpu_custom_call.1} parent=5 // pred_region
        %s79 = ssub.s32 %s13, 1
      $region12: #{tpu_custom_call.1} parent=5 // pred_fallthru
        _
      %p80 = scmp.lt.s32.totalorder %s13, 2
      // Predicated region
      $region13: #{tpu_custom_call.1} parent=5 // pred_check
        %p81 = pneg %p80
      $region14: #{tpu_custom_call.1} parent=5 // pred_check_branch
        %83 = sbr.rel (%p81) target = $region16
      $region15: #{tpu_custom_call.1} parent=5 // pred_region
        // Predicated region
        $region17: #{tpu_custom_call.1} parent=15 // pred_check
          %p84 = pneg %p33
        $region18: #{tpu_custom_call.1} parent=15 // pred_check_branch
          %86 = sbr.rel (%p84) target = $region20
        $region19: #{tpu_custom_call.1} parent=15 // pred_region
          %s87 = sand.u32 %s23, 1
          %s88 = scalar_lea.sflag [#allocation3], %s87
          %s89 = sand.u32 %s23, 1
          %s90 = scalar_lea.vmem [#allocation2], %s89
          %s92 = ssub.s32 16, 16
          %93 = vsyncadd %s88, %s92
          %s94 = smul.addr %s13, 16
          %s95 = scalar_lea.hbm %s0, %s94
          %s97 = sshll.u32 %s90, 4
          %s98 = int_to_ptr.vmem [resolvable:$true] %s97
          %100 = dma.hbm_to_vmem [thread:$0]  %s95, 16, %s98, %s88
        $region20: #{tpu_custom_call.1} parent=15 // pred_fallthru
          _
      $region16: #{tpu_custom_call.1} parent=5 // pred_fallthru
        _
      %p101 = scmp.le.s32.totalorder 1, %s13
      %p102 = scmp.lt.s32.totalorder %s13, 3
      %p103 = pnand %p101, %p102
      %p104 = pneg %p103
      // Predicated region
      $region21: #{tpu_custom_call.1} parent=5 // pred_check
        _
      $region22: #{tpu_custom_call.1} parent=5 // pred_check_branch
        %106 = sbr.rel (%p103) target = $region24
      $region23: #{tpu_custom_call.1} parent=5 // pred_region
        %s107 = ssub.s32 %s13, 1
        %s108 = sand.u32 %s26, 1
        %s109 = scalar_lea.sflag [#allocation3], %s108
        %s110 = sand.u32 %s26, 1
        %s111 = scalar_lea.vmem [#allocation2], %s110
        // Predicated region
        $region25: #{tpu_custom_call.1} parent=23 // pred_check
          %p112 = pneg %p39
        $region26: #{tpu_custom_call.1} parent=23 // pred_check_branch
          %114 = sbr.rel (%p112) target = $region28
        $region27: #{tpu_custom_call.1} parent=23 // pred_region
          %115 = dma.done %s109, 16
        $region28: #{tpu_custom_call.1} parent=23 // pred_fallthru
          _
        %s116 = sand.u32 %s26, 1
        %s117 = scalar_lea.sflag [#allocation3], %s116
        %s118 = sand.u32 %s26, 1
        %s119 = scalar_lea.vmem [#allocation2], %s118
        %p120 = pneg %p39
        %p121 = pneg %p36
        %p122 = pneg %p65
        %p123 = pneg %p62
        %s124 = sand.u32 %s52, 1
        %s125 = scalar_lea.sflag [#allocation4], %s124
        %s126 = sand.u32 %s52, 1
        %s127 = smul.addr %s126, 8
        %s128 = scalar_lea.vmem [#allocation5], %s127
        %v129 = vld [vmem:[%s111] sm:$0x1]
        %v130 = vmul.f32 %v129, %v129
        %v131 = vmul.f32 %v130, %v129
        %v132 = vmul.f32 %v131, %v129
        %v133 = vmul.f32 %v132, %v129
        %v134 = vmul.f32 %v133, %v129
        %v135 = vmul.f32 %v134, %v129
        %v137 = vlaneseq
        %v138 = vshrl.u32 %v137, 7
        %v139 = vsub.s32 0, %v138
        %v140 = vrot.slane %v129, %v139
        %v143 = vlaneseq
        %v144 = vshrl.u32 %v143, 7
        %v145 = vsub.s32 0, %v144
        %v146 = vrot.slane %v130, %v145
        %v149 = vlaneseq
        %v150 = vshrl.u32 %v149, 7
        %v151 = vsub.s32 0, %v150
        %v152 = vrot.slane %v131, %v151
        %v155 = vlaneseq
        %v156 = vshrl.u32 %v155, 7
        %v157 = vsub.s32 0, %v156
        %v158 = vrot.slane %v132, %v157
        %v161 = vlaneseq
        %v162 = vshrl.u32 %v161, 7
        %v163 = vsub.s32 0, %v162
        %v164 = vrot.slane %v133, %v163
        %v167 = vlaneseq
        %v168 = vshrl.u32 %v167, 7
        %v169 = vsub.s32 0, %v168
        %v170 = vrot.slane %v134, %v169
        %v173 = vlaneseq
        %v174 = vshrl.u32 %v173, 7
        %v175 = vsub.s32 0, %v174
        %v176 = vrot.slane %v135, %v175
        %vm178 = vcmask 1040384
        %v179 = vsel %vm178, 1.0, %v140
        %vm180 = vcmask 1041408
        %v181 = vsel %vm180, %v179, %v146
        %vm182 = vcmask 1042432
        %v183 = vsel %vm182, %v181, %v152
        %vm184 = vcmask 1043456
        %v185 = vsel %vm184, %v183, %v158
        %vm186 = vcmask 1044480
        %v187 = vsel %vm186, %v185, %v164
        %vm188 = vcmask 1045504
        %v189 = vsel %vm188, %v187, %v170
        %vm190 = vcmask 1046528
        %v191 = vsel %vm190, %v189, %v176
        %192 = vst [vmem:[%s128] sm:$0xff] %v191
        %s193 = sand.u32 %s52, 1
        %s194 = scalar_lea.sflag [#allocation4], %s193
        %s195 = sand.u32 %s52, 1
        %s196 = smul.addr %s195, 8
        %s197 = scalar_lea.vmem [#allocation5], %s196
        // Predicated region
        $region29: #{tpu_custom_call.1} parent=23 // pred_check
          %p198 = pneg %p62
        $region30: #{tpu_custom_call.1} parent=23 // pred_check_branch
          %200 = sbr.rel (%p198) target = $region32
        $region31: #{tpu_custom_call.1} parent=23 // pred_region
          %s202 = ssub.s32 128, 128
          %203 = vsyncadd %s194, %s202
          %s204 = smul.addr %s18, 128
          %s205 = scalar_lea.hbm %s1, %s204
          %s207 = sshll.u32 %s197, 4
          %s208 = int_to_ptr.vmem [resolvable:$true] %s207
          %210 = dma.vmem_to_hbm [thread:$0]  %s208, 128, %s205, %s194
        $region32: #{tpu_custom_call.1} parent=23 // pred_fallthru
          _
      $region24: #{tpu_custom_call.1} parent=5 // pred_fallthru
        _
      %p211 = scmp.le.s32.totalorder 2, %s13
      // Predicated region
      $region33: #{tpu_custom_call.1} parent=5 // pred_check
        %p212 = pneg %p211
      $region34: #{tpu_custom_call.1} parent=5 // pred_check_branch
        %214 = sbr.rel (%p212) target = $region36
      $region35: #{tpu_custom_call.1} parent=5 // pred_region
        %s215 = ssub.s32 %s13, 2
        // Predicated region
        $region37: #{tpu_custom_call.1} parent=35 // pred_check
          %p216 = pneg %p68
        $region38: #{tpu_custom_call.1} parent=35 // pred_check_branch
          %218 = sbr.rel (%p216) target = $region40
        $region39: #{tpu_custom_call.1} parent=35 // pred_region
          %s219 = sand.u32 %s53, 1
          %s220 = scalar_lea.sflag [#allocation4], %s219
          %s221 = sand.u32 %s53, 1
          %s222 = smul.addr %s221, 8
          %s223 = scalar_lea.vmem [#allocation5], %s222
          %224 = dma.done %s220, 128
        $region40: #{tpu_custom_call.1} parent=35 // pred_fallthru
          _
      $region36: #{tpu_custom_call.1} parent=5 // pred_fallthru
        _
    $region6: #{tpu_custom_call.1} parent=1 // loop_footer
      %s17 = sadd.s32 1, %s13
    $region7: #{tpu_custom_call.1} parent=1 // loop_footer_branch
      %12 = sbr.rel target = $region3
    $region8: #{tpu_custom_call.1} parent=1 // loop_exit
      _
    %225 = vsyncpa [#allocation3], 1
    %s226 = scalar_lea.sflag [#allocation3], 1
    %227 = vsyncpa %s226, 1
    %228 = vsyncpa [#allocation4], 1
    %s229 = scalar_lea.sflag [#allocation4], 1
    %230 = vsyncpa %s229, 1

</llo_original>
